<compile_context>
chip_gen: v7x
topology: tpu7x:2x2x1
jax: 0.10.0
libtpu: 0.0.40
codegen_flags: <defaults>
</compile_context>

<pallas_src>
import functools

import jax
import jax.numpy as jnp
from jax.experimental import pallas as pl
from jax.experimental.pallas import tpu as pltpu

_J = 9                      # number of body joints in the 6D-rotation block of *_global
_FOOT_IDX = (7, 8, 10, 11)  # foot joints used for the contact / sliding loss


# ------------------------------- Pallas kernel --------------------------------------
def _vertex_loss_kernel(vrec_ref, vtar_ref, cdiff_ref, cmask_ref, out_ref, *,
                        tm, m_total, w_mse, w_vel, w_acc, needs_mask):
    """Weighted partial sum of the three vertex losses over one tile of frames.

    vrec_ref / vtar_ref : (tm, V*3) raw vertices, (vertex, xyz) flattened on lanes
    cdiff_ref           : (tm, 3)  f32 per-frame (rec_xyz_trans - tar_trans)
    cmask_ref           : (3, V*3) f32 one-hot x/y/z coordinate masks over the lane axis
    out_ref             : (8, 128) f32, the scalar partial broadcast over the block
    """
    # Upcast in VMEM: inputs may be bf16; all math/accumulation in f32.
    e = vrec_ref[...].astype(jnp.float32) - vtar_ref[...].astype(jnp.float32)  # (tm, DV)

    # Per-frame translation difference tiled with period 3 across the flat lane axis.
    c = cdiff_ref[...].astype(jnp.float32)                  # (tm, 3)
    cm = cmask_ref[...]                                     # (3, DV)
    ctile = (c[:, 0:1] * cm[0:1, :]
             + c[:, 1:2] * cm[1:2, :]
             + c[:, 2:3] * cm[2:3, :])                      # (tm, DV)

    d = e + ctile                                           # full vert_rec - vert_tar
    mse_row = jnp.sum(d * d, axis=1, keepdims=True)         # (tm, 1)

    # The reference "velocity"/"acceleration" differences run along the *vertex* axis
    # (axis 1 of (bs*n, V, 3)) -> a lane shift of 3 in the flat layout.  The per-frame
    # translation is constant across vertices, so it cancels and e is used directly.
    ev = e[:, 3:] - e[:, :-3]                               # (tm, 3*(V-1))
    vel_row = jnp.sum(ev * ev, axis=1, keepdims=True)
    ea = ev[:, 3:] - ev[:, :-3]                             # 2nd diff from the 1st diff
    acc_row = jnp.sum(ea * ea, axis=1, keepdims=True)

    total_row = w_mse * mse_row + w_vel * vel_row + w_acc * acc_row   # (tm, 1)

    if needs_mask:
        # Ragged last block: rows beyond m_total hold unspecified data -> select away
        # (per-row select after the lane reduction; garbage rows never leak).
        rows = jax.lax.broadcasted_iota(jnp.int32, (tm, 1), 0)
        valid = (pl.program_id(0) * tm + rows) < m_total
        total_row = jnp.where(valid, total_row, 0.0)

    total = jnp.sum(total_row, axis=0, keepdims=True)       # (1, 1)
    out_ref[...] = jnp.broadcast_to(total, out_ref.shape)   # lane-dense full-vreg store


def _tile_budget():
    """Generation-aware VMEM budgeting (pipeline-buffer budget, scoped limit)."""
    try:
        cap = int(pltpu.get_tpu_info().vmem_capacity_bytes)
    except Exception:
        cap = 64 * 1024 * 1024          # conservative: v7x per-TensorCore VMEM
    budget = min(cap * 3 // 8, 48 * 1024 * 1024)   # double-buffered pipeline tiles
    limit = min(cap * 3 // 4, 96 * 1024 * 1024)    # scoped VMEM limit
    return budget, limit


def _vertex_loss_total(vrec, vtar, cdiff, weights):
    """Fully weighted (mse + 5*vel + 5*acc) vertex loss via the Pallas kernel.

    vrec, vtar : (M, V, 3) raw vertices (f32 or bf16).  cdiff : (M, 3) f32.
    """
    M, V, _ = vrec.shape
    DV = V * 3
    w_mse, w_vel, w_acc = weights
    vr = vrec.reshape(M, DV)            # free reshape -> lane-dense layout
    vt = vtar.reshape(M, DV)

    budget, vmem_limit = _tile_budget()
    in_bytes = vr.dtype.itemsize
    # Per-frame bytes: two vertex tiles + the lane-padded (tm,3)->(tm,128) cdiff tile.
    bytes_per_row = 2 * DV * in_bytes + 128 * 4
    fixed_bytes = 2 * 4 * (8 * DV + 8 * 128)      # cmask + packed output, double-buffered
    tm = (budget - fixed_bytes) // (2 * bytes_per_row)      # 2 pipeline buffers / input
    tm = max(8, min(tm // 8 * 8, 1024))
    if M >= 32:                                   # keep >= 4 blocks for megacore sharding
        tm = min(tm, max(8, (M // 4) // 8 * 8))
    tm = min(tm, max(8, M // 8 * 8))
    n_blocks = pl.cdiv(M, tm)
    m_pad = n_blocks * tm

    # Only the tiny per-frame translation diff is padded host-side; the big vertex
    # arrays are consumed ragged (last block masked in-kernel) -> no extra HBM pass.
    if m_pad != M:
        cdiff = jnp.pad(cdiff, ((0, m_pad - M), (0, 0)))

    coord = jnp.arange(DV, dtype=jnp.int32) % 3
    cmask = (coord[None, :] == jnp.arange(3, dtype=jnp.int32)[:, None]).astype(jnp.float32)

    kernel = functools.partial(
        _vertex_loss_kernel, tm=tm, m_total=M,
        w_mse=w_mse, w_vel=w_vel, w_acc=w_acc, needs_mask=(m_pad != M))

    partials = pl.pallas_call(
        kernel,
        out_shape=jax.ShapeDtypeStruct((n_blocks * 8, 128), jnp.float32),
        grid_spec=pltpu.PrefetchScalarGridSpec(
            num_scalar_prefetch=0,
            grid=(n_blocks,),
            in_specs=[
                pl.BlockSpec((tm, DV), lambda g: (g, 0)),
                pl.BlockSpec((tm, DV), lambda g: (g, 0)),
                pl.BlockSpec((tm, 3), lambda g: (g, 0)),
                pl.BlockSpec((3, DV), lambda g: (0, 0)),
            ],
            out_specs=pl.BlockSpec((8, 128), lambda g: (g, 0)),
        ),
        compiler_params=pltpu.CompilerParams(
            dimension_semantics=("parallel",),
            vmem_limit_bytes=vmem_limit),
    )(vr, vt, cdiff, cmask)          # 4 inputs <-> 4 in_specs

    return jnp.sum(partials.reshape(n_blocks, 8, 128)[:, 0, 0])


# ----------------------------- small plain-JAX pieces --------------------------------
def _estimate_linear_velocity(data_seq, dt):
    """Forward diff (first frame), central diff (middle), backward diff (last)."""
    init_vel = (data_seq[:, 1:2] - data_seq[:, 0:1]) / dt
    middle_vel = (data_seq[:, 2:] - data_seq[:, :-2]) / (2.0 * dt)
    final_vel = (data_seq[:, -1:] - data_seq[:, -2:-1]) / dt
    return jnp.concatenate([init_vel, middle_vel, final_vel], axis=1)


def _velocity2position(vel_seq, dt, init_pos):
    """pos[0] = init_pos ; pos[i] = pos[i-1] + vel[i-1] * dt."""
    init = init_pos[:, None, :]
    csum = init + jnp.cumsum(vel_seq[:, :-1] * dt, axis=1)
    return jnp.concatenate([init, csum], axis=1)


def _non_vertex_losses(rec_global, tar_global, tar_trans, joints_rec_raw, pose_fps):
    """All scalar-sized loss terms of GlobalLoss.forward (tiny tensors, plain JAX)."""
    bs = tar_global.shape[0]
    n = min(tar_global.shape[1], rec_global.shape[1])
    j = _J
    dt = 1.0 / pose_fps

    rec_global = rec_global[:, :n]
    tar_global = tar_global[:, :n]
    tar_trans = tar_trans[:, :n]

    tar_contact = tar_global[:, :, j * 6 + 3:j * 6 + 7]
    rec_contact = rec_global[:, :, j * 6 + 3:j * 6 + 7]
    loss_contact = jnp.mean((rec_contact - tar_contact) ** 2)

    rec_trans = rec_global[:, :, j * 6:j * 6 + 3]
    tar_trans_vel_x = _estimate_linear_velocity(tar_trans[:, :, 0:1], dt)
    tar_trans_vel_z = _estimate_linear_velocity(tar_trans[:, :, 2:3], dt)
    # TODO(synk): velocity2position is an inherently sequential prefix scan over a
    # (bs, n, 1) tensor; kept as a plain-JAX cumsum rather than a Pallas kernel.
    rec_x_trans = _velocity2position(rec_trans[:, :, 0:1], dt, tar_trans[:, 0, 0:1])
    rec_z_trans = _velocity2position(rec_trans[:, :, 2:3], dt, tar_trans[:, 0, 2:3])
    rec_y_trans = rec_trans[:, :, 1:2]
    rec_xyz_trans = jnp.concatenate([rec_x_trans, rec_y_trans, rec_z_trans], axis=-1)

    l1 = lambda a, b: jnp.mean(jnp.abs(a - b))
    loss_trans_vel = (l1(rec_trans[:, :, 0:1], tar_trans_vel_x)
                      + l1(rec_trans[:, :, 2:3], tar_trans_vel_z))
    v3 = (l1(rec_trans[:, 1:, 0:1] - rec_trans[:, :-1, 0:1],
             tar_trans_vel_x[:, 1:] - tar_trans_vel_x[:, :-1])
          + l1(rec_trans[:, 1:, 2:3] - rec_trans[:, :-1, 2:3],
               tar_trans_vel_z[:, 1:] - tar_trans_vel_z[:, :-1]))
    a3 = (l1(rec_trans[:, 2:, 0:1] + rec_trans[:, :-2, 0:1] - 2 * rec_trans[:, 1:-1, 0:1],
             tar_trans_vel_x[:, 2:] + tar_trans_vel_x[:, :-2] - 2 * tar_trans_vel_x[:, 1:-1])
          + l1(rec_trans[:, 2:, 2:3] + rec_trans[:, :-2, 2:3] - 2 * rec_trans[:, 1:-1, 2:3],
               tar_trans_vel_z[:, 2:] + tar_trans_vel_z[:, :-2] - 2 * tar_trans_vel_z[:, 1:-1]))
    v2 = l1(rec_xyz_trans[:, 1:] - rec_xyz_trans[:, :-1], tar_trans[:, 1:] - tar_trans[:, :-1])
    a2 = l1(rec_xyz_trans[:, 2:] + rec_xyz_trans[:, :-2] - 2 * rec_xyz_trans[:, 1:-1],
            tar_trans[:, 2:] + tar_trans[:, :-2] - 2 * tar_trans[:, 1:-1])
    loss_trans = l1(rec_xyz_trans, tar_trans)

    # Foot-contact / sliding loss (bs*n*4*3 elements) -- tiny, plain JAX.
    joints_rec = joints_rec_raw + rec_xyz_trans.reshape(bs * n, 3)[:, None, :]
    joints_rec = joints_rec.reshape(bs, n, -1, 3)
    model_feet = joints_rec[:, :, jnp.array(_FOOT_IDX)]          # (bs, n, 4, 3)
    foot_v = jnp.zeros_like(model_feet)
    foot_v = foot_v.at[:, :-1].set(model_feet[:, 1:] - model_feet[:, :-1])
    static_idx = rec_contact > 0.95
    foot_v = jnp.where(static_idx[..., None], foot_v, 0.0)
    foot_loss = jnp.mean(jnp.abs(foot_v))

    non_vertex = (loss_contact + 5 * v3 + 5 * a3 + 5 * v2 + 5 * a2
                  + loss_trans_vel + loss_trans + 20 * foot_loss)
    return non_vertex, rec_xyz_trans, tar_trans, bs, n


# ---------------------------------- forward ------------------------------------------
def global_loss_forward(rec_global, tar_global, tar_betas, tar_trans, Loss_6D,
                        vertices_rec, vertices_tar, pose_fps=30):
    """JAX/Pallas equivalent of GlobalLoss.forward."""
    del tar_betas, Loss_6D   # unused by the reference forward as well
    rec_global = jnp.asarray(rec_global, jnp.float32)
    tar_global = jnp.asarray(tar_global, jnp.float32)
    tar_trans = jnp.asarray(tar_trans, jnp.float32)
    joints_rec_raw = jnp.asarray(vertices_rec["joints"], jnp.float32)
    # Keep the native dtype of the big vertex arrays (f32 or bf16): the kernel upcasts
    # in VMEM, so no wrapper-side cast / extra HBM pass is paid.
    vr = jnp.asarray(vertices_rec["vertices"])
    vt = jnp.asarray(vertices_tar["vertices"])

    non_vertex, rec_xyz_trans, tar_trans_n, bs, n = _non_vertex_losses(
        rec_global, tar_global, tar_trans, joints_rec_raw, pose_fps)

    M, V, _ = vr.shape
    # TODO(synk): latent assumption from the reference — the SMPL vertex arrays must
    # correspond exactly to the n = min(rec_frames, tar_frames) truncated sequence.
    assert M == bs * n, (M, bs, n)
    cdiff = rec_xyz_trans.reshape(M, 3) - tar_trans_n.reshape(M, 3)

    weights = (1.0 / (M * V * 3),            # vectices_loss (MSE mean)
               5.0 / (M * (V - 1) * 3),      # 5 * vertices_vel_loss
               5.0 / (M * (V - 2) * 3))      # 5 * vertices_acc_loss
    vertex_total = _vertex_loss_total(vr, vt, cdiff, weights)
    return non_vertex + vertex_total


# ------------------------------ pure-JAX reference -----------------------------------
def _reference_global_loss(rec_global, tar_global, tar_trans, vertices_rec, vertices_tar,
                           pose_fps=30):
    rec_global = jnp.asarray(rec_global, jnp.float32)
    tar_global = jnp.asarray(tar_global, jnp.float32)
    tar_trans = jnp.asarray(tar_trans, jnp.float32)
    joints_rec_raw = jnp.asarray(vertices_rec["joints"], jnp.float32)
    vr = jnp.asarray(vertices_rec["vertices"], jnp.float32)
    vt = jnp.asarray(vertices_tar["vertices"], jnp.float32)

    non_vertex, rec_xyz_trans, tar_trans_n, bs, n = _non_vertex_losses(
        rec_global, tar_global, tar_trans, joints_rec_raw, pose_fps)

    vert_rec = vr + rec_xyz_trans.reshape(bs * n, 3)[:, None, :]
    vert_tar = vt + tar_trans_n.reshape(bs * n, 3)[:, None, :]
    mse = lambda a, b: jnp.mean((a - b) ** 2)
    vectices_loss = mse(vert_rec, vert_tar)
    vertices_vel_loss = mse(vert_rec[:, 1:] - vert_rec[:, :-1],
                            vert_tar[:, 1:] - vert_tar[:, :-1])
    vertices_acc_loss = mse(vert_rec[:, 2:] + vert_rec[:, :-2] - 2 * vert_rec[:, 1:-1],
                            vert_tar[:, 2:] + vert_tar[:, :-2] - 2 * vert_tar[:, 1:-1])
    return non_vertex + (vectices_loss + 5 * vertices_vel_loss + 5 * vertices_acc_loss)


if __name__ == "__main__":
    bs, n = 2, 9        # bs*n = 18: not a multiple of the 8-row tile -> exercises the
                        # ragged last block + in-kernel row masking path
    C = _J * 6 + 7      # 61 channels: 54 rot6d + 3 root trans-velocity + 4 foot contact
    V = 16              # vertices per frame (small demo; real SMPL-X ~10475)
    NJ = 12             # joints per frame (foot_idx needs indices up to 11)

    key = jax.random.PRNGKey(0)
    k = jax.random.split(key, 8)
    rec_global = jax.random.normal(k[0], (bs, n, C), dtype=jnp.float32)
    tar_global = jax.random.normal(k[1], (bs, n, C), dtype=jnp.float32)
    tar_betas = jax.random.normal(k[2], (bs, n, 300), dtype=jnp.float32)   # unused
    tar_trans = jax.random.normal(k[3], (bs, n, 3), dtype=jnp.float32)
    vertices_rec = {
        "vertices": jax.random.normal(k[4], (bs * n, V, 3), dtype=jnp.float32),
        "joints": jax.random.normal(k[5], (bs * n, NJ, 3), dtype=jnp.float32),
    }
    vertices_tar = {
        "vertices": jax.random.normal(k[6], (bs * n, V, 3), dtype=jnp.float32),
        "joints": jax.random.normal(k[7], (bs * n, NJ, 3), dtype=jnp.float32),
    }

    loss = global_loss_forward(rec_global, tar_global, tar_betas, tar_trans,
                               Loss_6D=False,
                               vertices_rec=vertices_rec, vertices_tar=vertices_tar,
                               pose_fps=30)
    loss = jax.block_until_ready(loss)

    ref = _reference_global_loss(rec_global, tar_global, tar_trans,
                                 vertices_rec, vertices_tar, pose_fps=30)
    ref = jax.block_until_ready(ref)
    assert jnp.allclose(loss, ref, rtol=1e-4, atol=1e-4), (loss, ref)

    print("KERNEL_OK")
</pallas_src>

<mosaic_0001>
module attributes {stable_mosaic.version = 11 : i64} {
  func.func @_vertex_loss_kernel(%arg0: i32, %arg1: memref<16x48xf32, #tpu.memory_space<vmem>>, %arg2: memref<16x48xf32, #tpu.memory_space<vmem>>, %arg3: memref<16x3xf32, #tpu.memory_space<vmem>>, %arg4: memref<3x48xf32, #tpu.memory_space<vmem>>, %arg5: memref<8x128xf32, #tpu.memory_space<vmem>>) attributes {dimension_semantics = [#tpu.dimension_semantics<parallel>], iteration_bounds = array<i64: 2>, scalar_prefetch = 0 : i64, scratch_operands = 0 : i64, tpu.core_type = #tpu.core_type<tc>, window_params = [{transform_indices = @transform_0, window_bounds = array<i64: 16, 48>}, {transform_indices = @transform_1, window_bounds = array<i64: 16, 48>}, {transform_indices = @transform_2, window_bounds = array<i64: 16, 3>}, {pipeline_mode = #tpu.pipeline_mode<synchronous>, transform_indices = @transform_3, window_bounds = array<i64: 3, 48>}, {transform_indices = @transform_4, window_bounds = array<i64: 8, 128>}]} {
    %c0 = arith.constant 0 : index
    %c0_0 = arith.constant 0 : index
    %0 = vector.load %arg1[%c0, %c0_0] : memref<16x48xf32, #tpu.memory_space<vmem>>, vector<16x48xf32>
    %c0_1 = arith.constant 0 : index
    %c0_2 = arith.constant 0 : index
    %1 = vector.load %arg2[%c0_1, %c0_2] : memref<16x48xf32, #tpu.memory_space<vmem>>, vector<16x48xf32>
    %2 = arith.subf %0, %1 : vector<16x48xf32>
    %c0_3 = arith.constant 0 : index
    %c0_4 = arith.constant 0 : index
    %3 = vector.load %arg3[%c0_3, %c0_4] : memref<16x3xf32, #tpu.memory_space<vmem>>, vector<16x3xf32>
    %c0_5 = arith.constant 0 : index
    %c0_6 = arith.constant 0 : index
    %4 = vector.load %arg4[%c0_5, %c0_6] : memref<3x48xf32, #tpu.memory_space<vmem>>, vector<3x48xf32>
    %5 = vector.extract_strided_slice %3 {offsets = [0, 0], sizes = [16, 1], strides = [1, 1]} : vector<16x3xf32> to vector<16x1xf32>
    %6 = vector.extract_strided_slice %4 {offsets = [0, 0], sizes = [1, 48], strides = [1, 1]} : vector<3x48xf32> to vector<1x48xf32>
    %7 = vector.broadcast %5 : vector<16x1xf32> to vector<16x48xf32>
    %8 = vector.broadcast %6 : vector<1x48xf32> to vector<16x48xf32>
    %9 = arith.mulf %7, %8 : vector<16x48xf32>
    %10 = vector.extract_strided_slice %3 {offsets = [0, 1], sizes = [16, 1], strides = [1, 1]} : vector<16x3xf32> to vector<16x1xf32>
    %11 = vector.extract_strided_slice %4 {offsets = [1, 0], sizes = [1, 48], strides = [1, 1]} : vector<3x48xf32> to vector<1x48xf32>
    %12 = vector.broadcast %10 : vector<16x1xf32> to vector<16x48xf32>
    %13 = vector.broadcast %11 : vector<1x48xf32> to vector<16x48xf32>
    %14 = arith.mulf %12, %13 : vector<16x48xf32>
    %15 = arith.addf %9, %14 : vector<16x48xf32>
    %16 = vector.extract_strided_slice %3 {offsets = [0, 2], sizes = [16, 1], strides = [1, 1]} : vector<16x3xf32> to vector<16x1xf32>
    %17 = vector.extract_strided_slice %4 {offsets = [2, 0], sizes = [1, 48], strides = [1, 1]} : vector<3x48xf32> to vector<1x48xf32>
    %18 = vector.broadcast %16 : vector<16x1xf32> to vector<16x48xf32>
    %19 = vector.broadcast %17 : vector<1x48xf32> to vector<16x48xf32>
    %20 = arith.mulf %18, %19 : vector<16x48xf32>
    %21 = arith.addf %15, %20 : vector<16x48xf32>
    %22 = arith.addf %2, %21 : vector<16x48xf32>
    %23 = arith.mulf %22, %22 : vector<16x48xf32>
    %cst = arith.constant dense<0.000000e+00> : vector<16xf32>
    %24 = vector.multi_reduction <add>, %23, %cst [1] : vector<16x48xf32> to vector<16xf32>
    %25 = vector.shape_cast %24 : vector<16xf32> to vector<16x1xf32>
    %26 = vector.extract_strided_slice %2 {offsets = [0, 3], sizes = [16, 45], strides = [1, 1]} : vector<16x48xf32> to vector<16x45xf32>
    %27 = vector.extract_strided_slice %2 {offsets = [0, 0], sizes = [16, 45], strides = [1, 1]} : vector<16x48xf32> to vector<16x45xf32>
    %28 = arith.subf %26, %27 : vector<16x45xf32>
    %29 = arith.mulf %28, %28 : vector<16x45xf32>
    %cst_7 = arith.constant dense<0.000000e+00> : vector<16xf32>
    %30 = vector.multi_reduction <add>, %29, %cst_7 [1] : vector<16x45xf32> to vector<16xf32>
    %31 = vector.shape_cast %30 : vector<16xf32> to vector<16x1xf32>
    %32 = vector.extract_strided_slice %28 {offsets = [0, 3], sizes = [16, 42], strides = [1, 1]} : vector<16x45xf32> to vector<16x42xf32>
    %33 = vector.extract_strided_slice %28 {offsets = [0, 0], sizes = [16, 42], strides = [1, 1]} : vector<16x45xf32> to vector<16x42xf32>
    %34 = arith.subf %32, %33 : vector<16x42xf32>
    %35 = arith.mulf %34, %34 : vector<16x42xf32>
    %cst_8 = arith.constant dense<0.000000e+00> : vector<16xf32>
    %36 = vector.multi_reduction <add>, %35, %cst_8 [1] : vector<16x42xf32> to vector<16xf32>
    %37 = vector.shape_cast %36 : vector<16xf32> to vector<16x1xf32>
    %cst_9 = arith.constant 0.00115740742 : f32
    %38 = vector.broadcast %cst_9 : f32 to vector<16x1xf32>
    %39 = arith.mulf %38, %25 : vector<16x1xf32>
    %cst_10 = arith.constant 0.00617283955 : f32
    %40 = vector.broadcast %cst_10 : f32 to vector<16x1xf32>
    %41 = arith.mulf %40, %31 : vector<16x1xf32>
    %42 = arith.addf %39, %41 : vector<16x1xf32>
    %cst_11 = arith.constant 0.00661375653 : f32
    %43 = vector.broadcast %cst_11 : f32 to vector<16x1xf32>
    %44 = arith.mulf %43, %37 : vector<16x1xf32>
    %45 = arith.addf %42, %44 : vector<16x1xf32>
    %46 = tpu.iota {dimensions = array<i32: 0>} : vector<16x1xi32>
    %c16_i32 = arith.constant 16 : i32
    %47 = arith.muli %arg0, %c16_i32 : i32
    %48 = vector.broadcast %47 : i32 to vector<16x1xi32>
    %49 = arith.addi %48, %46 : vector<16x1xi32>
    %c18_i32 = arith.constant 18 : i32
    %50 = vector.broadcast %c18_i32 : i32 to vector<16x1xi32>
    %51 = arith.cmpi slt, %49, %50 : vector<16x1xi32>
    %cst_12 = arith.constant 0.000000e+00 : f32
    %52 = vector.broadcast %cst_12 : f32 to vector<16x1xf32>
    %53 = arith.select %51, %45, %52 : vector<16x1xi1>, vector<16x1xf32>
    %cst_13 = arith.constant dense<0.000000e+00> : vector<1xf32>
    %54 = vector.multi_reduction <add>, %53, %cst_13 [0] : vector<16x1xf32> to vector<1xf32>
    %55 = vector.shape_cast %54 : vector<1xf32> to vector<1x1xf32>
    %56 = vector.shape_cast %55 : vector<1x1xf32> to vector<1x1xf32>
    %57 = vector.broadcast %56 : vector<1x1xf32> to vector<8x128xf32>
    %c0_14 = arith.constant 0 : index
    %c0_15 = arith.constant 0 : index
    %58 = vector.load %arg5[%c0_14, %c0_15] : memref<8x128xf32, #tpu.memory_space<vmem>>, vector<8x128xf32>
    tpu.vector_store %arg5[%c0_14, %c0_15], %57 {strides = array<i32>} : memref<8x128xf32, #tpu.memory_space<vmem>>, vector<8x128xf32>,
    return
  }
  func.func @transform_0(%arg0: i32) -> (i32, i32) {
    %c0_i32 = arith.constant 0 : i32
    %c0_i32_0 = arith.constant 0 : i32
    return %arg0, %c0_i32 : i32, i32
  }
  func.func @transform_1(%arg0: i32) -> (i32, i32) {
    %c0_i32 = arith.constant 0 : i32
    %c0_i32_0 = arith.constant 0 : i32
    return %arg0, %c0_i32 : i32, i32
  }
  func.func @transform_2(%arg0: i32) -> (i32, i32) {
    %c0_i32 = arith.constant 0 : i32
    %c0_i32_0 = arith.constant 0 : i32
    return %arg0, %c0_i32 : i32, i32
  }
  func.func @transform_3(%arg0: i32) -> (i32, i32) {
    %c0_i32 = arith.constant 0 : i32
    %c0_i32_0 = arith.constant 0 : i32
    %c0_i32_1 = arith.constant 0 : i32
    return %c0_i32, %c0_i32_0 : i32, i32
  }
  func.func @transform_4(%arg0: i32) -> (i32, i32) {
    %c0_i32 = arith.constant 0 : i32
    %c0_i32_0 = arith.constant 0 : i32
    return %arg0, %c0_i32 : i32, i32
  }
}

</mosaic_0001>

<llo_original>
// kernel: tpu_custom_call.1
$region0: #{tpu_custom_call.1}
  #allocation0 [shape = 'u32[]', space=smem, size = 0x4, offset = 0x4, fixed_abs, tag = 'smem constant byte address 0x4 - core index']
  #allocation1 [shape = 'u32[144,128]{1,0:T(1,128)}', space=vmem, size = 0x12000, scoped, tag = 'internal scratch']
  %s0 = inlined_call_operand.vmem [shape: f32[18,48], index: 0, kind: input, shape index: {}]
  %s1 = inlined_call_operand.hbm [shape: f32[18,48], index: 1, kind: input, shape index: {}]
  %s2 = inlined_call_operand.vmem [shape: f32[32,3], index: 2, kind: input, shape index: {}]
  %s3 = inlined_call_operand.vmem [shape: f32[3,48], index: 3, kind: input, shape index: {}]
  %s4 = inlined_call_operand.hbm [shape: f32[16,128], index: 4, kind: output, shape index: {}]
  %s5 = sld [smem:[#allocation0]]
  $region53: #{tpu_custom_call.1} parent=0
    _
  %s7 = ssub.s32 1, %s5
  %s8 = scalar_select 0, %s7, %s5
  $region1: #{tpu_custom_call.1} parent=0
    #allocation2 [shape = 'u8[16384]{0}', space=vmem, size = 0x4000, scoped, tag = 'input window, operand 1']
    #allocation3 [shape = 's32[2]{0}', space=sflag, size = 0x8, scoped, tag = 'scoped memory for tpu_custom_call.1']
    #allocation4 [shape = 's32[2]{0}', space=sflag, size = 0x8, scoped, tag = 'scoped memory for tpu_custom_call.1']
    #allocation5 [shape = 'u8[8192]{0}', space=vmem, size = 0x2000, scoped, tag = 'output window, operand 0']
    %9 = vsyncpa [#allocation3], 0
    %s10 = scalar_lea.sflag [#allocation3], 1
    %11 = vsyncpa %s10, 0
    %12 = vsyncpa [#allocation4], 0
    %s13 = scalar_lea.sflag [#allocation4], 1
    %14 = vsyncpa %s13, 0
    loop: start=0, step=1, limit=4
    $region2: #{tpu_custom_call.1} parent=1 // loop_pre_header
      _
    $region3: #{tpu_custom_call.1} parent=1 // loop_header
      %s16 = sphi 0, %s20
      %p17 = scmp.ge.s32.totalorder %s16, 4
      %s26 = sphi 0, %s28
      %s29 = sphi 0, %s26
      %s30 = sphi 0, %s29
      %s46 = sphi 0, %s30
      %s52 = sphi 0, %s54
      %s55 = sphi 0, %s52
      %s56 = sphi 0, %s55
      %s72 = sphi 0, %s56
      %s78 = sphi 0, %s80
      %s81 = sphi 0, %s78
      %s82 = sphi 0, %s81
      %s98 = sphi 0, %s82
      %s102 = sphi 0, %s102
      %s104 = sphi 0, %s102
      %s105 = sphi 0, %s104
      %s119 = sphi 0, %s105
      %s125 = sphi 0, %s127
      %s128 = sphi 0, %s125
      %s129 = sphi 0, %s128
      %s145 = sphi 0, %s129
    $region4: #{tpu_custom_call.1} parent=1 // loop_header_branch
      %19 = sbr.rel (%p17) target = $region8
    $region5: #{tpu_custom_call.1} parent=1 // loop_body
      %s21 = ssub.s32 %s16, 1
      %s22 = ssub.s32 %s16, 2
      %s23 = sadd.s32 %s16, 1
      %s24 = ssub.s32 %s16, %s23
      %p25 = scmp.eq.s32.totalorder %s24, 0
      %s27 = sadd.s32 %s26, 1
      %s28 = scalar_select %p25, %s26, %s27
      %p31 = pneg %p25
      %p32 = scmp.eq.s32.totalorder %s16, 1
      %p33 = por %p31, %p32
      %p34 = scmp.ne.s32.totalorder %s26, %s29
      %p35 = scmp.eq.s32.totalorder %s16, 0
      %p36 = por %p34, %p35
      %p37 = scmp.ne.s32.totalorder %s26, %s29
      %p38 = scmp.eq.s32.totalorder %s21, 1
      %p39 = por %p37, %p38
      %p40 = scmp.ne.s32.totalorder %s29, %s30
      %p41 = scmp.eq.s32.totalorder %s21, 0
      %p42 = por %p40, %p41
      %p43 = scmp.ne.s32.totalorder %s29, %s30
      %p44 = scmp.eq.s32.totalorder %s22, 1
      %p45 = por %p43, %p44
      %p47 = scmp.ne.s32.totalorder %s30, %s46
      %p48 = scmp.eq.s32.totalorder %s22, 0
      %p49 = por %p47, %p48
      %s50 = ssub.s32 %s16, %s23
      %p51 = scmp.eq.s32.totalorder %s50, 0
      %s53 = sadd.s32 %s52, 1
      %s54 = scalar_select %p51, %s52, %s53
      %p57 = pneg %p51
      %p58 = scmp.eq.s32.totalorder %s16, 1
      %p59 = por %p57, %p58
      %p60 = scmp.ne.s32.totalorder %s52, %s55
      %p61 = scmp.eq.s32.totalorder %s16, 0
      %p62 = por %p60, %p61
      %p63 = scmp.ne.s32.totalorder %s52, %s55
      %p64 = scmp.eq.s32.totalorder %s21, 1
      %p65 = por %p63, %p64
      %p66 = scmp.ne.s32.totalorder %s55, %s56
      %p67 = scmp.eq.s32.totalorder %s21, 0
      %p68 = por %p66, %p67
      %p69 = scmp.ne.s32.totalorder %s55, %s56
      %p70 = scmp.eq.s32.totalorder %s22, 1
      %p71 = por %p69, %p70
      %p73 = scmp.ne.s32.totalorder %s56, %s72
      %p74 = scmp.eq.s32.totalorder %s22, 0
      %p75 = por %p73, %p74
      %s76 = ssub.s32 %s16, %s23
      %p77 = scmp.eq.s32.totalorder %s76, 0
      %s79 = sadd.s32 %s78, 1
      %s80 = scalar_select %p77, %s78, %s79
      %p83 = pneg %p77
      %p84 = scmp.eq.s32.totalorder %s16, 1
      %p85 = por %p83, %p84
      %p86 = scmp.ne.s32.totalorder %s78, %s81
      %p87 = scmp.eq.s32.totalorder %s16, 0
      %p88 = por %p86, %p87
      %p89 = scmp.ne.s32.totalorder %s78, %s81
      %p90 = scmp.eq.s32.totalorder %s21, 1
      %p91 = por %p89, %p90
      %p92 = scmp.ne.s32.totalorder %s81, %s82
      %p93 = scmp.eq.s32.totalorder %s21, 0
      %p94 = por %p92, %p93
      %p95 = scmp.ne.s32.totalorder %s81, %s82
      %p96 = scmp.eq.s32.totalorder %s22, 1
      %p97 = por %p95, %p96
      %p99 = scmp.ne.s32.totalorder %s82, %s98
      %p100 = scmp.eq.s32.totalorder %s22, 0
      %p101 = por %p99, %p100
      %s103 = sadd.s32 %s102, 1
      %p106 = scmp.eq.s32.totalorder %s16, 1
      %p107 = scmp.ne.s32.totalorder %s102, %s104
      %p108 = scmp.eq.s32.totalorder %s16, 0
      %p109 = por %p107, %p108
      %p110 = scmp.ne.s32.totalorder %s102, %s104
      %p111 = scmp.eq.s32.totalorder %s21, 1
      %p112 = por %p110, %p111
      %p113 = scmp.ne.s32.totalorder %s104, %s105
      %p114 = scmp.eq.s32.totalorder %s21, 0
      %p115 = por %p113, %p114
      %p116 = scmp.ne.s32.totalorder %s104, %s105
      %p117 = scmp.eq.s32.totalorder %s22, 1
      %p118 = por %p116, %p117
      %p120 = scmp.ne.s32.totalorder %s105, %s119
      %p121 = scmp.eq.s32.totalorder %s22, 0
      %p122 = por %p120, %p121
      %s123 = ssub.s32 %s16, %s23
      %p124 = scmp.eq.s32.totalorder %s123, 0
      %s126 = sadd.s32 %s125, 1
      %s127 = scalar_select %p124, %s125, %s126
      %p130 = pneg %p124
      %p131 = scmp.eq.s32.totalorder %s16, 1
      %p132 = por %p130, %p131
      %p133 = scmp.ne.s32.totalorder %s125, %s128
      %p134 = scmp.eq.s32.totalorder %s16, 0
      %p135 = por %p133, %p134
      %p136 = scmp.ne.s32.totalorder %s125, %s128
      %p137 = scmp.eq.s32.totalorder %s21, 1
      %p138 = por %p136, %p137
      %p139 = scmp.ne.s32.totalorder %s128, %s129
      %p140 = scmp.eq.s32.totalorder %s21, 0
      %p141 = por %p139, %p140
      %p142 = scmp.ne.s32.totalorder %s128, %s129
      %p143 = scmp.eq.s32.totalorder %s22, 1
      %p144 = por %p142, %p143
      %p146 = scmp.ne.s32.totalorder %s129, %s145
      %p147 = scmp.eq.s32.totalorder %s22, 0
      %p148 = por %p146, %p147
      %p149 = scmp.le.s32.totalorder 1, %s16
      %p150 = scmp.lt.s32.totalorder %s16, 3
      %p151 = pnand %p149, %p150
      %p152 = pneg %p151
      // Predicated region
      $region9: #{tpu_custom_call.1} parent=5 // pred_check
        _
      $region10: #{tpu_custom_call.1} parent=5 // pred_check_branch
        %154 = sbr.rel (%p151) target = $region12
      $region11: #{tpu_custom_call.1} parent=5 // pred_region
        %s155 = ssub.s32 %s16, 1
        // Predicated region
        $region13: #{tpu_custom_call.1} parent=11 // pred_check
          %p156 = pneg %p115
        $region14: #{tpu_custom_call.1} parent=11 // pred_check_branch
          %158 = sbr.rel (%p156) target = $region16
        $region15: #{tpu_custom_call.1} parent=11 // pred_region
          _
        $region16: #{tpu_custom_call.1} parent=11 // pred_fallthru
          _
      $region12: #{tpu_custom_call.1} parent=5 // pred_fallthru
        _
      %p159 = scmp.lt.s32.totalorder %s16, 2
      // Predicated region
      $region17: #{tpu_custom_call.1} parent=5 // pred_check
        %p160 = pneg %p159
      $region18: #{tpu_custom_call.1} parent=5 // pred_check_branch
        %162 = sbr.rel (%p160) target = $region20
      $region19: #{tpu_custom_call.1} parent=5 // pred_region
        // Predicated region
        $region21: #{tpu_custom_call.1} parent=19 // pred_check
          %p163 = pneg %p36
        $region22: #{tpu_custom_call.1} parent=19 // pred_check_branch
          %165 = sbr.rel (%p163) target = $region24
        $region23: #{tpu_custom_call.1} parent=19 // pred_region
          %s166 = smul.u32 2, %s16
          %s167 = ssub.s32 3, %s166
          %p168 = scmp.lt.s32.totalorder %s167, 2
          %s169 = scalar_select %p168, %s167, 2
          %s170 = smul.u32 128, %s169
          %p171 = scmp.lt.s32.totalorder %s166, 2
          %s172 = scalar_select %p171, %s166, 2
          %s173 = smul.addr %s172, 8
          %s174 = scalar_lea.vmem %s0, %s173
          %s175 = smul.u32 2, %s16
          %s176 = ssub.s32 3, %s175
          %p177 = scmp.lt.s32.totalorder %s176, 2
          %s178 = scalar_select %p177, %s176, 2
          %s179 = smul.u32 128, %s178
        $region24: #{tpu_custom_call.1} parent=19 // pred_fallthru
          _
        // Predicated region
        $region25: #{tpu_custom_call.1} parent=19 // pred_check
          %p180 = pneg %p62
        $region26: #{tpu_custom_call.1} parent=19 // pred_check_branch
          %182 = sbr.rel (%p180) target = $region28
        $region27: #{tpu_custom_call.1} parent=19 // pred_region
          %s183 = sand.u32 %s52, 1
          %s184 = scalar_lea.sflag [#allocation3], %s183
          %s185 = sand.u32 %s52, 1
          %s186 = smul.addr %s185, 16
          %s187 = scalar_lea.vmem [#allocation2], %s186
          %s188 = smul.u32 2, %s16
          %s189 = ssub.s32 3, %s188
          %p190 = scmp.lt.s32.totalorder %s189, 2
          %s191 = scalar_select %p190, %s189, 2
          %s192 = smul.u32 128, %s191
          %s194 = ssub.s32 256, %s192
          %195 = vsyncadd %s184, %s194
          %p196 = scmp.ne.s32.totalorder 0, %s192
          %s197 = smul.addr %s188, 128
          %s198 = scalar_lea.hbm %s1, %s197
          %s199 = smul.u32 8, %s191
          %s200 = sshll.u32 %s187, 4
          %s201 = int_to_ptr.vmem [resolvable:$true] %s200
          %s202 = sshll.u32 %s199, 4
          %206 = dma.hbm_to_vmem [thread:$0]  (%p196), %s198, %s202, %s201, %s184, 128, 128, 8
        $region28: #{tpu_custom_call.1} parent=19 // pred_fallthru
          _
        // Predicated region
        $region29: #{tpu_custom_call.1} parent=19 // pred_check
          %p207 = pneg %p88
        $region30: #{tpu_custom_call.1} parent=19 // pred_check_branch
          %209 = sbr.rel (%p207) target = $region32
        $region31: #{tpu_custom_call.1} parent=19 // pred_region
          %s210 = smul.u32 2, %s16
          %p211 = scmp.lt.s32.totalorder %s210, 3
          %s212 = scalar_select %p211, %s210, 3
          %s213 = smul.addr %s212, 8
          %s214 = scalar_lea.vmem %s2, %s213
          %s215 = smul.u32 2, %s16
        $region32: #{tpu_custom_call.1} parent=19 // pred_fallthru
          _
      $region20: #{tpu_custom_call.1} parent=5 // pred_fallthru
        _
      %p216 = scmp.le.s32.totalorder 1, %s16
      %p217 = scmp.lt.s32.totalorder %s16, 3
      %p218 = pnand %p216, %p217
      %p219 = pneg %p218
      // Predicated region
      $region33: #{tpu_custom_call.1} parent=5 // pred_check
        _
      $region34: #{tpu_custom_call.1} parent=5 // pred_check_branch
        %221 = sbr.rel (%p218) target = $region36
      $region35: #{tpu_custom_call.1} parent=5 // pred_region
        %s222 = ssub.s32 %s16, 1
        %s223 = sand.u32 %s55, 1
        %s224 = scalar_lea.sflag [#allocation3], %s223
        %s225 = sand.u32 %s55, 1
        %s226 = smul.addr %s225, 16
        %s227 = scalar_lea.vmem [#allocation2], %s226
        // Predicated region
        $region37: #{tpu_custom_call.1} parent=35 // pred_check
          %p228 = pneg %p68
        $region38: #{tpu_custom_call.1} parent=35 // pred_check_branch
          %230 = sbr.rel (%p228) target = $region40
        $region39: #{tpu_custom_call.1} parent=35 // pred_region
          %231 = dma.done %s224, 256
        $region40: #{tpu_custom_call.1} parent=35 // pred_fallthru
          _
        %s232 = smul.u32 2, %s21
        %s233 = ssub.s32 3, %s232
        %p234 = scmp.lt.s32.totalorder %s233, 2
        %s235 = scalar_select %p234, %s233, 2
        %s236 = smul.u32 128, %s235
        %p237 = scmp.lt.s32.totalorder %s232, 2
        %s238 = scalar_select %p237, %s232, 2
        %s239 = smul.addr %s238, 8
        %s240 = scalar_lea.vmem %s0, %s239
        %p241 = pneg %p42
        %p242 = pneg %p39
        %s243 = sand.u32 %s55, 1
        %s244 = scalar_lea.sflag [#allocation3], %s243
        %s245 = sand.u32 %s55, 1
        %s246 = smul.addr %s245, 16
        %s247 = scalar_lea.vmem [#allocation2], %s246
        %p248 = pneg %p68
        %p249 = pneg %p65
        %s250 = smul.u32 2, %s21
        %p251 = scmp.lt.s32.totalorder %s250, 3
        %s252 = scalar_select %p251, %s250, 3
        %s253 = smul.addr %s252, 8
        %s254 = scalar_lea.vmem %s2, %s253
        %p255 = pneg %p94
        %p256 = pneg %p91
        %p257 = pneg %p115
        %p258 = pneg %p112
        %p259 = pneg %p141
        %p260 = pneg %p138
        %s261 = sand.u32 %s128, 1
        %s262 = scalar_lea.sflag [#allocation4], %s261
        %s263 = sand.u32 %s128, 1
        %s264 = smul.addr %s263, 8
        %s265 = scalar_lea.vmem [#allocation5], %s264
        %s266 = smul.u32 2, %s21
        %s267 = ssub.s32 3, %s266
        %p268 = scmp.lt.s32.totalorder %s267, 2
        %s269 = scalar_select %p268, %s267, 2
        %s270 = smul.u32 128, %s269
        %p271 = scmp.lt.s32.totalorder %s266, 2
        %s272 = scalar_select %p271, %s266, 2
        %s273 = smul.addr %s272, 8
        %s274 = scalar_lea.vmem %s0, %s273
        %s275 = smul.u32 2, %s21
        %s276 = ssub.s32 3, %s275
        %p277 = scmp.lt.s32.totalorder %s276, 2
        %s278 = scalar_select %p277, %s276, 2
        %s279 = smul.u32 128, %s278
        %s280 = smul.u32 2, %s21
        %s281 = ssub.s32 3, %s280
        %p282 = scmp.lt.s32.totalorder %s281, 2
        %s283 = scalar_select %p282, %s281, 2
        %s284 = smul.u32 128, %s283
        %s285 = smul.u32 2, %s21
        %p286 = scmp.lt.s32.totalorder %s285, 3
        %s287 = scalar_select %p286, %s285, 3
        %s288 = smul.addr %s287, 8
        %s289 = scalar_lea.vmem %s2, %s288
        %s290 = smul.u32 2, %s21
        %v291 = vld [vmem:[%s274] sm:$0xff]
        %v292 = vld [vmem:[%s274 + $0x8] sm:$0xff]
        %v293 = vld [vmem:[%s227] sm:$0xff]
        %v294 = vld [vmem:[%s227 + $0x8] sm:$0xff]
        %v295 = vsub.f32 %v291, %v293
        %v296 = vsub.f32 %v292, %v294
        %v297 = vld [vmem:[%s289] sm:$0xff]
        %v298 = vld [vmem:[%s289 + $0x8] sm:$0xff]
        %v299 = vld [vmem:[%s3] sm:$0x7]
        %301 = vset.pattern.permute.xlu0 0
        %302 = vperm.xlu0 %301, %v297
        %v303 = vpop.permute.xlu0 %302
        %306 = vset.pattern.permute.xlu0 0
        %307 = vperm.xlu0 %306, %v298
        %v308 = vpop.permute.xlu0 %307
        %v310 = vlaneseq
        %v311 = vshrl.u32 %v310, 7
        %v312 = vsub.s32 0, %v311
        %v313 = vrot.slane %v299, %v312
        %v314 = vmul.f32 %v303, %v313
        %v315 = vmul.f32 %v308, %v313
        %316 = vset.pattern.permute.xlu0 1
        %317 = vperm.xlu0 %316, %v297
        %v318 = vpop.permute.xlu0 %317
        %320 = vset.pattern.permute.xlu0 1
        %321 = vperm.xlu0 %320, %v298
        %v322 = vpop.permute.xlu0 %321
        %v324 = vlaneseq
        %v325 = vshrl.u32 %v324, 7
        %v326 = vsub.s32 1, %v325
        %v327 = vrot.slane %v299, %v326
        %v328 = vmul.f32 %v318, %v327
        %v329 = vmul.f32 %v322, %v327
        %v330 = vadd.f32 %v314, %v328
        %v331 = vadd.f32 %v315, %v329
        %332 = vset.pattern.permute.xlu0 2
        %333 = vperm.xlu0 %332, %v297
        %v334 = vpop.permute.xlu0 %333
        %336 = vset.pattern.permute.xlu0 2
        %337 = vperm.xlu0 %336, %v298
        %v338 = vpop.permute.xlu0 %337
        %v340 = vlaneseq
        %v341 = vshrl.u32 %v340, 7
        %v342 = vsub.s32 2, %v341
        %v343 = vrot.slane %v299, %v342
        %v344 = vmul.f32 %v334, %v343
        %v345 = vmul.f32 %v338, %v343
        %v346 = vadd.f32 %v330, %v344
        %v347 = vadd.f32 %v331, %v345
        %v348 = vadd.f32 %v295, %v346
        %v349 = vadd.f32 %v296, %v347
        %v350 = vmul.f32 %v348, %v348
        %v351 = vmul.f32 %v349, %v349
        %vm352 = vcmask 392192
        %v353 = vsel %vm352, %v350, 0.0
        %354 = vadd.xlane.f32.xlu0 %v353
        %v355 = vpop.xlane.xlu0 %354
        %v356 = vsel %vm352, %v351, 0.0
        %357 = vadd.xlane.f32.xlu0 %v356
        %v358 = vpop.xlane.xlu0 %357
        %361 = vrot.lane.b32.xlu0 %v295, 3
        %v362 = vpop.permute.xlu0 %361
        %363 = vrot.lane.b32.xlu0 %v296, 3
        %v364 = vpop.permute.xlu0 %363
        %v367 = vsub.f32 %v295, %v362
        %v368 = vsub.f32 %v296, %v364
        %v369 = vmul.f32 %v367, %v367
        %v370 = vmul.f32 %v368, %v368
        %373 = vrot.lane.b32.xlu0 %v369, 125
        %v374 = vpop.permute.xlu0 %373
        %375 = vrot.lane.b32.xlu0 %v370, 125
        %v376 = vpop.permute.xlu0 %375
        %vm379 = vcmask 367616
        %v380 = vsel %vm379, %v374, 0.0
        %381 = vadd.xlane.f32.xlu0 %v380
        %v382 = vpop.xlane.xlu0 %381
        %v383 = vsel %vm379, %v376, 0.0
        %384 = vadd.xlane.f32.xlu0 %v383
        %v385 = vpop.xlane.xlu0 %384
        %388 = vrot.lane.b32.xlu0 %v367, 3
        %v389 = vpop.permute.xlu0 %388
        %390 = vrot.lane.b32.xlu0 %v368, 3
        %v391 = vpop.permute.xlu0 %390
        %v394 = vsub.f32 %v367, %v389
        %v395 = vsub.f32 %v368, %v391
        %v396 = vmul.f32 %v394, %v394
        %v397 = vmul.f32 %v395, %v395
        %400 = vrot.lane.b32.xlu0 %v396, 122
        %v401 = vpop.permute.xlu0 %400
        %402 = vrot.lane.b32.xlu0 %v397, 122
        %v403 = vpop.permute.xlu0 %402
        %vm406 = vcmask 343040
        %v407 = vsel %vm406, %v401, 0.0
        %408 = vadd.xlane.f32.xlu0 %v407
        %v409 = vpop.xlane.xlu0 %408
        %v410 = vsel %vm406, %v403, 0.0
        %411 = vadd.xlane.f32.xlu0 %v410
        %v412 = vpop.xlane.xlu0 %411
        %v413 = vmul.f32 %v355, 0.0011574074
        %v414 = vmul.f32 %v358, 0.0011574074
        %v415 = vmul.f32 %v382, 0.0061728396
        %v416 = vmul.f32 %v385, 0.0061728396
        %v417 = vadd.f32 %v413, %v415
        %v418 = vadd.f32 %v414, %v416
        %v419 = vmul.f32 %v409, 0.0066137565
        %v420 = vmul.f32 %v412, 0.0066137565
        %v421 = vadd.f32 %v417, %v419
        %v422 = vadd.f32 %v418, %v420
        %v423 = vlaneseq
        %v424 = vshrl.u32 %v423, 7
        %v425 = vadd.s32 %v424, 8
        %s426 = smul.u32 %s21, 16
        %v427 = vstv %s426
        %v428 = vadd.s32 %v427, %v424
        %v429 = vadd.s32 %v427, %v425
        %vm430 = vcmp.lt.s32.totalorder %v428, 18
        %vm431 = vcmp.lt.s32.totalorder %v429, 18
        %v432 = vsel %vm430, %v421, 0.0
        %v433 = vsel %vm431, %v422, 0.0
        %v434 = vadd.f32 %v432, %v433
        %v435 = vrot.slane %v434, 4
        %v436 = vadd.f32 %v434, %v435
        %v437 = vrot.slane %v436, 2
        %v438 = vadd.f32 %v436, %v437
        %v439 = vrot.slane %v438, 1
        %v440 = vadd.f32 %v438, %v439
        %441 = vst [vmem:[%s265] sm:$0xff] %v440
        %s442 = sand.u32 %s128, 1
        %s443 = scalar_lea.sflag [#allocation4], %s442
        %s444 = sand.u32 %s128, 1
        %s445 = smul.addr %s444, 8
        %s446 = scalar_lea.vmem [#allocation5], %s445
        // Predicated region
        $region41: #{tpu_custom_call.1} parent=35 // pred_check
          %p447 = pneg %p138
        $region42: #{tpu_custom_call.1} parent=35 // pred_check_branch
          %449 = sbr.rel (%p447) target = $region44
        $region43: #{tpu_custom_call.1} parent=35 // pred_region
          %s451 = ssub.s32 128, 128
          %452 = vsyncadd %s443, %s451
          %s453 = smul.addr %s21, 128
          %s454 = scalar_lea.hbm %s4, %s453
          %s456 = sshll.u32 %s446, 4
          %s457 = int_to_ptr.vmem [resolvable:$true] %s456
          %459 = dma.vmem_to_hbm [thread:$0]  %s457, 128, %s454, %s443
        $region44: #{tpu_custom_call.1} parent=35 // pred_fallthru
          _
      $region36: #{tpu_custom_call.1} parent=5 // pred_fallthru
        _
      %p460 = scmp.le.s32.totalorder 2, %s16
      // Predicated region
      $region45: #{tpu_custom_call.1} parent=5 // pred_check
        %p461 = pneg %p460
      $region46: #{tpu_custom_call.1} parent=5 // pred_check_branch
        %463 = sbr.rel (%p461) target = $region48
      $region47: #{tpu_custom_call.1} parent=5 // pred_region
        %s464 = ssub.s32 %s16, 2
        // Predicated region
        $region49: #{tpu_custom_call.1} parent=47 // pred_check
          %p465 = pneg %p144
        $region50: #{tpu_custom_call.1} parent=47 // pred_check_branch
          %467 = sbr.rel (%p465) target = $region52
        $region51: #{tpu_custom_call.1} parent=47 // pred_region
          %s468 = sand.u32 %s129, 1
          %s469 = scalar_lea.sflag [#allocation4], %s468
          %s470 = sand.u32 %s129, 1
          %s471 = smul.addr %s470, 8
          %s472 = scalar_lea.vmem [#allocation5], %s471
          %473 = dma.done %s469, 128
        $region52: #{tpu_custom_call.1} parent=47 // pred_fallthru
          _
      $region48: #{tpu_custom_call.1} parent=5 // pred_fallthru
        _
    $region6: #{tpu_custom_call.1} parent=1 // loop_footer
      %s20 = sadd.s32 1, %s16
    $region7: #{tpu_custom_call.1} parent=1 // loop_footer_branch
      %15 = sbr.rel target = $region3
    $region8: #{tpu_custom_call.1} parent=1 // loop_exit
      _
    %474 = vsyncpa [#allocation3], 1
    %s475 = scalar_lea.sflag [#allocation3], 1
    %476 = vsyncpa %s475, 1
    %477 = vsyncpa [#allocation4], 1
    %s478 = scalar_lea.sflag [#allocation4], 1
    %479 = vsyncpa %s478, 1

</llo_original>
